<compile_context>
chip_gen: v5e
topology: v5e:2x2
jax: 0.10.0
libtpu: 0.0.40
codegen_flags: <defaults>
</compile_context>

<pallas_src>
import functools

import jax
import jax.numpy as jnp
from jax.experimental import pallas as pl
from jax.experimental.pallas import tpu as pltpu

_MIB = 1024 * 1024


# ---------------------------------------------------------------------------
# Kernels
# ---------------------------------------------------------------------------
def _node_apply_kernel(x_ref, w_ref, b_ref, o_ref, *, activation):
    """Full-K path: whole contraction dim resident, direct write."""
    # x_ref: (tile_n, d_in)   pipelined per row-tile
    # w_ref: (d_in, d_out)    resident (pre-transposed in the wrapper)
    # b_ref: (1, d_out)       resident, f32
    # o_ref: (tile_n, d_out)
    h = jnp.dot(x_ref[...], w_ref[...], preferred_element_type=jnp.float32)
    h = h + b_ref[...]                      # broadcast (1, d_out) over rows
    if activation == "relu":
        h = jnp.maximum(h, 0.0)
    o_ref[...] = h.astype(o_ref.dtype)


def _node_apply_kernel_ksplit(x_ref, w_ref, b_ref, o_ref, acc_ref, *, activation):
    """K-split path (P3): f32 VMEM accumulator over the contraction grid axis."""
    k = pl.program_id(1)

    @pl.when(k == 0)
    def _init():
        acc_ref[...] = jnp.zeros_like(acc_ref)

    acc_ref[...] += jnp.dot(x_ref[...], w_ref[...],
                            preferred_element_type=jnp.float32)

    @pl.when(k == pl.num_programs(1) - 1)
    def _finalize():
        h = acc_ref[...] + b_ref[...]
        if activation == "relu":
            h = jnp.maximum(h, 0.0)
        o_ref[...] = h.astype(o_ref.dtype)


# ---------------------------------------------------------------------------
# Generation-aware sizing
# ---------------------------------------------------------------------------
@functools.lru_cache(maxsize=1)
def _generation_budget():
    """Tile budget / vmem limit / megacore behaviour per TPU generation."""
    try:
        cap = int(pltpu.get_tpu_info().vmem_capacity_bytes)
    except Exception:
        cap = 64 * _MIB  # sizing heuristic only; assume the tightest generation
    if cap <= 64 * _MIB:
        # v7x-class: 64 MiB physical VMEM per TC, 2 TensorCores per chip.
        return dict(budget=48 * _MIB, limit_cap=56 * _MIB,
                    target_rows=512, two_tc=True)
    # v5e / v6e: 128 MiB physical VMEM, single TensorCore.
    return dict(budget=96 * _MIB, limit_cap=100 * _MIB,
                target_rows=1024, two_tc=False)


def _choose_tiles(n, d_in, d_out, xw_itemsize, out_itemsize, *,
                  budget, target_rows, two_tc):
    """Pick (tile_n, tile_k). tile_k == d_in means no K split."""
    MIN_ROWS = 256

    def rows_available(tk, ksplit):
        # Double-buffered BlockSpec allocations (+ f32 accumulator if K split).
        fixed = 2 * tk * d_out * xw_itemsize + 2 * d_out * 4        # W + bias
        per_row = (2 * tk * xw_itemsize                              # x tile
                   + 2 * d_out * out_itemsize                        # out tile
                   + (d_out * 4 if ksplit else 0))                   # accumulator
        avail = budget - fixed
        return 0 if avail <= 0 else int(avail // per_row)

    tile_k = d_in
    rows = rows_available(d_in, False)
    if rows < min(MIN_ROWS, n):
        # Weight too large to keep fully resident: split the contraction dim so
        # the row tile stays >= 256 instead of collapsing to 8-row tiles.
        tk = max(128, ((d_in + 127) // 128) * 128)
        while tk > 128 and rows_available(tk, True) < min(MIN_ROWS, n):
            tk = max(128, ((tk // 2) // 128) * 128)
        tile_k = tk
        rows = rows_available(tk, True)

    rows = max(rows, 8)

    if n <= min(target_rows, rows):
        # One row-tile covers all nodes; round up to a sublane multiple.
        return ((n + 7) // 8) * 8, tile_k

    tile_n = min(target_rows, rows)
    if tile_n >= 256:
        tile_n = (tile_n // 256) * 256     # full passes on 256x256 MXUs
    elif tile_n >= 128:
        tile_n = (tile_n // 128) * 128
    else:
        tile_n = max(8, (tile_n // 8) * 8)

    if two_tc:
        # Megacore: prefer an even grid so ("parallel",) shards across both
        # TensorCores, but stay 256-aligned and never below 256 rows.
        grid_n = -(-n // tile_n)
        if grid_n > 1 and grid_n % 2 == 1 and tile_n >= 512:
            tile_n = max(256, ((tile_n // 2) // 256) * 256)

    return tile_n, tile_k


# ---------------------------------------------------------------------------
# Wrapper
# ---------------------------------------------------------------------------
def node_apply(node_features, weight, bias, *, activation="relu",
               tile_n=None, tile_k=None, use_bf16_matmul=False):
    """h = activation(node_features @ weight.T + bias) via Pallas.

    node_features: (N, D_in)
    weight:        (D_out, D_in)  (nn.Linear layout, passed as-is)
    bias:          (D_out,)
    """
    if activation not in ("relu", None):
        raise ValueError(f"unsupported activation: {activation!r}")

    n, d_in = node_features.shape
    d_out, d_in_w = weight.shape
    assert d_in == d_in_w, (d_in, d_in_w)
    assert bias.shape == (d_out,)

    out_dtype = node_features.dtype
    compute_dtype = jnp.bfloat16 if use_bf16_matmul else node_features.dtype

    # Hoist the weight transpose (and optional bf16 cast) to the wrapper: done
    # once per call (often folded into the parameter layout by XLA) instead of
    # an in-kernel transpose/cast on every grid step.
    x = node_features.astype(compute_dtype)
    wt = jnp.transpose(weight).astype(compute_dtype)          # (d_in, d_out)
    b2 = bias.reshape(1, d_out).astype(jnp.float32)

    gen = _generation_budget()
    xw_itemsize = jnp.dtype(compute_dtype).itemsize
    out_itemsize = jnp.dtype(out_dtype).itemsize

    auto_n, auto_k = _choose_tiles(
        n, d_in, d_out, xw_itemsize, out_itemsize,
        budget=gen["budget"], target_rows=gen["target_rows"],
        two_tc=gen["two_tc"])
    if tile_n is None:
        tile_n = auto_n
    if tile_k is None:
        tile_k = auto_k
    assert tile_k == d_in or tile_k % 128 == 0, "K tile must be lane-aligned"

    # Pad the contraction dim if K is split (zero columns/rows are harmless).
    k_pad = 0 if tile_k == d_in else (-d_in) % tile_k
    d_in_p = d_in + k_pad
    grid_k = d_in_p // tile_k

    # Pad rows up to a tile multiple; the extra rows are sliced off below.
    n_pad = (-n) % tile_n
    n_padded = n + n_pad
    grid_n = n_padded // tile_n
    assert tile_n % 8 == 0 or grid_n == 1, "row tile must satisfy (8,128) rule"

    if n_pad or k_pad:
        x = jnp.pad(x, ((0, n_pad), (0, k_pad)))
    if k_pad:
        wt = jnp.pad(wt, ((0, k_pad), (0, 0)))

    # Explicit VMEM limit from the tile footprint (double-buffered BlockSpecs),
    # clamped below the per-generation physical headroom.
    est = int(1.25 * (2 * tile_n * tile_k * xw_itemsize
                      + 2 * tile_n * d_out * out_itemsize
                      + 2 * tile_k * d_out * xw_itemsize
                      + 2 * d_out * 4
                      + (tile_n * d_out * 4 if grid_k > 1 else 0))) + (2 << 20)
    vmem_limit = min(max(est, 32 * _MIB), gen["limit_cap"])

    if grid_k == 1:
        kernel = functools.partial(_node_apply_kernel, activation=activation)
        grid_spec = pltpu.PrefetchScalarGridSpec(
            num_scalar_prefetch=0,
            grid=(grid_n,),
            in_specs=[
                pl.BlockSpec((tile_n, d_in_p), lambda i: (i, 0)),
                pl.BlockSpec((d_in_p, d_out), lambda i: (0, 0)),
                pl.BlockSpec((1, d_out), lambda i: (0, 0)),
            ],
            out_specs=pl.BlockSpec((tile_n, d_out), lambda i: (i, 0)),
        )
        semantics = ("parallel",)
    else:
        kernel = functools.partial(_node_apply_kernel_ksplit, activation=activation)
        grid_spec = pltpu.PrefetchScalarGridSpec(
            num_scalar_prefetch=0,
            grid=(grid_n, grid_k),                      # reduction axis last
            in_specs=[
                pl.BlockSpec((tile_n, tile_k), lambda i, k: (i, k)),
                pl.BlockSpec((tile_k, d_out), lambda i, k: (k, 0)),
                pl.BlockSpec((1, d_out), lambda i, k: (0, 0)),
            ],
            out_specs=pl.BlockSpec((tile_n, d_out), lambda i, k: (i, 0)),
            scratch_shapes=[pltpu.VMEM((tile_n, d_out), jnp.float32)],
        )
        semantics = ("parallel", "arbitrary")

    out = pl.pallas_call(
        kernel,
        out_shape=jax.ShapeDtypeStruct((n_padded, d_out), out_dtype),
        grid_spec=grid_spec,
        compiler_params=pltpu.CompilerParams(
            dimension_semantics=semantics,
            vmem_limit_bytes=vmem_limit,
        ),
    )(x, wt, b2)

    return out if n_pad == 0 else out[:n]


def node_apply_ref(node_features, weight, bias):
    return jnp.maximum(node_features @ weight.T + bias, 0.0)


if __name__ == "__main__":
    key = jax.random.PRNGKey(0)
    k_x, k_w, k_b = jax.random.split(key, 3)

    # Lane-dense D_out = 128 so output stores are unmasked vst.
    num_nodes, input_dim, output_dim = 1024, 64, 128

    x = jax.random.normal(k_x, (num_nodes, input_dim), dtype=jnp.float32)
    bound = 1.0 / (input_dim ** 0.5)
    weight = jax.random.uniform(k_w, (output_dim, input_dim),
                                minval=-bound, maxval=bound, dtype=jnp.float32)
    bias = jax.random.uniform(k_b, (output_dim,),
                              minval=-bound, maxval=bound, dtype=jnp.float32)
    ref = node_apply_ref(x, weight, bias)

    # 1) Auto-tiled path.
    out = jax.block_until_ready(node_apply(x, weight, bias))
    assert out.shape == (num_nodes, output_dim)
    assert jnp.allclose(out, ref, atol=1e-4, rtol=1e-4), "mismatch vs reference"

    # 2) Multi-tile pipelined path (grid_n = 4) regardless of generation.
    out_t = jax.block_until_ready(node_apply(x, weight, bias, tile_n=256))
    assert jnp.allclose(out_t, ref, atol=1e-4, rtol=1e-4), "tiled mismatch"

    # 3) Ragged N handled by pad + slice.
    x2 = jax.random.normal(k_x, (333, input_dim), dtype=jnp.float32)
    out2 = jax.block_until_ready(node_apply(x2, weight, bias))
    assert out2.shape == (333, output_dim)
    assert jnp.allclose(out2, node_apply_ref(x2, weight, bias),
                        atol=1e-4, rtol=1e-4), "ragged-N mismatch"

    # 4) K-split accumulator path (forced small tile_k -> grid_k = 2).
    input_dim2 = 256
    x3 = jax.random.normal(k_x, (512, input_dim2), dtype=jnp.float32)
    w3 = jax.random.uniform(k_w, (output_dim, input_dim2),
                            minval=-bound, maxval=bound, dtype=jnp.float32)
    out3 = jax.block_until_ready(node_apply(x3, w3, bias, tile_n=256, tile_k=128))
    assert jnp.allclose(out3, node_apply_ref(x3, w3, bias),
                        atol=1e-4, rtol=1e-4), "K-split mismatch"

    # 5) bf16 matmul path (loose tolerance for bf16 mantissa).
    out_bf = jax.block_until_ready(node_apply(x, weight, bias,
                                              use_bf16_matmul=True))
    assert jnp.allclose(out_bf, ref, atol=5e-2, rtol=5e-2), "bf16 mismatch"

    print("KERNEL_OK")
</pallas_src>

<mosaic_0001>
module attributes {stable_mosaic.version = 11 : i64} {
  func.func @_node_apply_kernel(%arg0: i32, %arg1: memref<512x64xf32, #tpu.memory_space<vmem>>, %arg2: memref<64x128xf32, #tpu.memory_space<vmem>>, %arg3: memref<1x128xf32, #tpu.memory_space<vmem>>, %arg4: memref<512x128xf32, #tpu.memory_space<vmem>>) attributes {dimension_semantics = [#tpu.dimension_semantics<parallel>], iteration_bounds = array<i64: 2>, scalar_prefetch = 0 : i64, scratch_operands = 0 : i64, tpu.core_type = #tpu.core_type<tc>, window_params = [{transform_indices = @transform_0, window_bounds = array<i64: 512, 64>}, {pipeline_mode = #tpu.pipeline_mode<synchronous>, transform_indices = @transform_1, window_bounds = array<i64: 64, 128>}, {pipeline_mode = #tpu.pipeline_mode<synchronous>, transform_indices = @transform_2, window_bounds = array<i64: 1, 128>}, {transform_indices = @transform_3, window_bounds = array<i64: 512, 128>}]} {
    %c0 = arith.constant 0 : index
    %c0_0 = arith.constant 0 : index
    %0 = vector.load %arg1[%c0, %c0_0] : memref<512x64xf32, #tpu.memory_space<vmem>>, vector<512x64xf32>
    %c0_1 = arith.constant 0 : index
    %c0_2 = arith.constant 0 : index
    %1 = vector.load %arg2[%c0_1, %c0_2] : memref<64x128xf32, #tpu.memory_space<vmem>>, vector<64x128xf32>
    %cst = arith.constant dense<0.000000e+00> : vector<512x128xf32>
    %2 = tpu.matmul %0, %1, %cst {dimension_numbers = #tpu.dot_dimension_numbers<[1], [0], [0], [1], [0, 0, 1, 1], [], []>} : vector<512x64xf32>, vector<64x128xf32>, vector<512x128xf32> -> vector<512x128xf32>
    %c0_3 = arith.constant 0 : index
    %c0_4 = arith.constant 0 : index
    %3 = vector.load %arg3[%c0_3, %c0_4] : memref<1x128xf32, #tpu.memory_space<vmem>>, vector<1x128xf32>
    %4 = vector.broadcast %3 : vector<1x128xf32> to vector<512x128xf32>
    %5 = arith.addf %2, %4 : vector<512x128xf32>
    %cst_5 = arith.constant 0.000000e+00 : f32
    %6 = vector.broadcast %cst_5 : f32 to vector<512x128xf32>
    %7 = arith.maximumf %5, %6 : vector<512x128xf32>
    %c0_6 = arith.constant 0 : index
    %c0_7 = arith.constant 0 : index
    %8 = vector.load %arg4[%c0_6, %c0_7] : memref<512x128xf32, #tpu.memory_space<vmem>>, vector<512x128xf32>
    tpu.vector_store %arg4[%c0_6, %c0_7], %7 {strides = array<i32>} : memref<512x128xf32, #tpu.memory_space<vmem>>, vector<512x128xf32>,
    return
  }
  func.func @transform_0(%arg0: i32) -> (i32, i32) {
    %c0_i32 = arith.constant 0 : i32
    %c0_i32_0 = arith.constant 0 : i32
    return %arg0, %c0_i32 : i32, i32
  }
  func.func @transform_1(%arg0: i32) -> (i32, i32) {
    %c0_i32 = arith.constant 0 : i32
    %c0_i32_0 = arith.constant 0 : i32
    %c0_i32_1 = arith.constant 0 : i32
    return %c0_i32, %c0_i32_0 : i32, i32
  }
  func.func @transform_2(%arg0: i32) -> (i32, i32) {
    %c0_i32 = arith.constant 0 : i32
    %c0_i32_0 = arith.constant 0 : i32
    %c0_i32_1 = arith.constant 0 : i32
    return %c0_i32, %c0_i32_0 : i32, i32
  }
  func.func @transform_3(%arg0: i32) -> (i32, i32) {
    %c0_i32 = arith.constant 0 : i32
    %c0_i32_0 = arith.constant 0 : i32
    return %arg0, %c0_i32 : i32, i32
  }
}

</mosaic_0001>

<llo_original>
// kernel: tpu_custom_call.1
$region0: #{tpu_custom_call.1}
  #allocation0 [shape = 'u32[]', space=smem, size = 0x4, offset = 0x4, fixed_abs, tag = 'smem constant byte address 0x4 - core index']
  #allocation1 [shape = 'u32[72,128]{1,0:T(1,128)}', space=vmem, size = 0x9000, scoped, tag = 'internal scratch']
  %s0 = inlined_call_operand.vmem [shape: f32[1024,64], index: 0, kind: input, shape index: {}]
  %s1 = inlined_call_operand.vmem [shape: f32[64,128], index: 1, kind: input, shape index: {}]
  %s2 = inlined_call_operand.vmem [shape: f32[1,128], index: 2, kind: input, shape index: {}]
  %s3 = inlined_call_operand.hbm [shape: f32[1024,128], index: 3, kind: output, shape index: {}]
  %s4 = sld [smem:[#allocation0]]
  $region45: #{tpu_custom_call.1} parent=0
    _
  %s6 = ssub.s32 1, %s4
  %s7 = scalar_select 0, %s6, %s4
  $region1: #{tpu_custom_call.1} parent=0
    #allocation2 [shape = 'u8[524288]{0}', space=vmem, size = 0x80000, scoped, tag = 'output window, operand 0']
    #allocation3 [shape = 's32[2]{0}', space=sflag, size = 0x8, scoped, tag = 'scoped memory for tpu_custom_call.1']
    %8 = vsyncpa [#allocation3], 0
    %s9 = scalar_lea.sflag [#allocation3], 1
    %10 = vsyncpa %s9, 0
    loop: start=0, step=1, limit=4
    $region2: #{tpu_custom_call.1} parent=1 // loop_pre_header
      _
    $region3: #{tpu_custom_call.1} parent=1 // loop_header
      %s12 = sphi 0, %s16
      %p13 = scmp.ge.s32.totalorder %s12, 4
      %s22 = sphi 0, %s24
      %s25 = sphi 0, %s22
      %s26 = sphi 0, %s25
      %s42 = sphi 0, %s26
      %s46 = sphi 0, %s46
      %s48 = sphi 0, %s46
      %s49 = sphi 0, %s48
      %s63 = sphi 0, %s49
      %s67 = sphi 0, %s67
      %s69 = sphi 0, %s67
      %s70 = sphi 0, %s69
      %s84 = sphi 0, %s70
      %s90 = sphi 0, %s92
      %s93 = sphi 0, %s90
      %s94 = sphi 0, %s93
      %s110 = sphi 0, %s94
    $region4: #{tpu_custom_call.1} parent=1 // loop_header_branch
      %15 = sbr.rel (%p13) target = $region8
    $region5: #{tpu_custom_call.1} parent=1 // loop_body
      %s17 = ssub.s32 %s12, 1
      %s18 = ssub.s32 %s12, 2
      %s19 = sadd.s32 %s12, 1
      %s20 = ssub.s32 %s12, %s19
      %p21 = scmp.eq.s32.totalorder %s20, 0
      %s23 = sadd.s32 %s22, 1
      %s24 = scalar_select %p21, %s22, %s23
      %p27 = pneg %p21
      %p28 = scmp.eq.s32.totalorder %s12, 1
      %p29 = por %p27, %p28
      %p30 = scmp.ne.s32.totalorder %s22, %s25
      %p31 = scmp.eq.s32.totalorder %s12, 0
      %p32 = por %p30, %p31
      %p33 = scmp.ne.s32.totalorder %s22, %s25
      %p34 = scmp.eq.s32.totalorder %s17, 1
      %p35 = por %p33, %p34
      %p36 = scmp.ne.s32.totalorder %s25, %s26
      %p37 = scmp.eq.s32.totalorder %s17, 0
      %p38 = por %p36, %p37
      %p39 = scmp.ne.s32.totalorder %s25, %s26
      %p40 = scmp.eq.s32.totalorder %s18, 1
      %p41 = por %p39, %p40
      %p43 = scmp.ne.s32.totalorder %s26, %s42
      %p44 = scmp.eq.s32.totalorder %s18, 0
      %p45 = por %p43, %p44
      %s47 = sadd.s32 %s46, 1
      %p50 = scmp.eq.s32.totalorder %s12, 1
      %p51 = scmp.ne.s32.totalorder %s46, %s48
      %p52 = scmp.eq.s32.totalorder %s12, 0
      %p53 = por %p51, %p52
      %p54 = scmp.ne.s32.totalorder %s46, %s48
      %p55 = scmp.eq.s32.totalorder %s17, 1
      %p56 = por %p54, %p55
      %p57 = scmp.ne.s32.totalorder %s48, %s49
      %p58 = scmp.eq.s32.totalorder %s17, 0
      %p59 = por %p57, %p58
      %p60 = scmp.ne.s32.totalorder %s48, %s49
      %p61 = scmp.eq.s32.totalorder %s18, 1
      %p62 = por %p60, %p61
      %p64 = scmp.ne.s32.totalorder %s49, %s63
      %p65 = scmp.eq.s32.totalorder %s18, 0
      %p66 = por %p64, %p65
      %s68 = sadd.s32 %s67, 1
      %p71 = scmp.eq.s32.totalorder %s12, 1
      %p72 = scmp.ne.s32.totalorder %s67, %s69
      %p73 = scmp.eq.s32.totalorder %s12, 0
      %p74 = por %p72, %p73
      %p75 = scmp.ne.s32.totalorder %s67, %s69
      %p76 = scmp.eq.s32.totalorder %s17, 1
      %p77 = por %p75, %p76
      %p78 = scmp.ne.s32.totalorder %s69, %s70
      %p79 = scmp.eq.s32.totalorder %s17, 0
      %p80 = por %p78, %p79
      %p81 = scmp.ne.s32.totalorder %s69, %s70
      %p82 = scmp.eq.s32.totalorder %s18, 1
      %p83 = por %p81, %p82
      %p85 = scmp.ne.s32.totalorder %s70, %s84
      %p86 = scmp.eq.s32.totalorder %s18, 0
      %p87 = por %p85, %p86
      %s88 = ssub.s32 %s12, %s19
      %p89 = scmp.eq.s32.totalorder %s88, 0
      %s91 = sadd.s32 %s90, 1
      %s92 = scalar_select %p89, %s90, %s91
      %p95 = pneg %p89
      %p96 = scmp.eq.s32.totalorder %s12, 1
      %p97 = por %p95, %p96
      %p98 = scmp.ne.s32.totalorder %s90, %s93
      %p99 = scmp.eq.s32.totalorder %s12, 0
      %p100 = por %p98, %p99
      %p101 = scmp.ne.s32.totalorder %s90, %s93
      %p102 = scmp.eq.s32.totalorder %s17, 1
      %p103 = por %p101, %p102
      %p104 = scmp.ne.s32.totalorder %s93, %s94
      %p105 = scmp.eq.s32.totalorder %s17, 0
      %p106 = por %p104, %p105
      %p107 = scmp.ne.s32.totalorder %s93, %s94
      %p108 = scmp.eq.s32.totalorder %s18, 1
      %p109 = por %p107, %p108
      %p111 = scmp.ne.s32.totalorder %s94, %s110
      %p112 = scmp.eq.s32.totalorder %s18, 0
      %p113 = por %p111, %p112
      %p114 = scmp.le.s32.totalorder 1, %s12
      %p115 = scmp.lt.s32.totalorder %s12, 3
      %p116 = pnand %p114, %p115
      %p117 = pneg %p116
      // Predicated region
      $region9: #{tpu_custom_call.1} parent=5 // pred_check
        _
      $region10: #{tpu_custom_call.1} parent=5 // pred_check_branch
        %119 = sbr.rel (%p116) target = $region12
      $region11: #{tpu_custom_call.1} parent=5 // pred_region
        %s120 = ssub.s32 %s12, 1
        // Predicated region
        $region13: #{tpu_custom_call.1} parent=11 // pred_check
          %p121 = pneg %p59
        $region14: #{tpu_custom_call.1} parent=11 // pred_check_branch
          %123 = sbr.rel (%p121) target = $region16
        $region15: #{tpu_custom_call.1} parent=11 // pred_region
          _
        $region16: #{tpu_custom_call.1} parent=11 // pred_fallthru
          _
        // Predicated region
        $region17: #{tpu_custom_call.1} parent=11 // pred_check
          %p124 = pneg %p80
        $region18: #{tpu_custom_call.1} parent=11 // pred_check_branch
          %126 = sbr.rel (%p124) target = $region20
        $region19: #{tpu_custom_call.1} parent=11 // pred_region
          _
        $region20: #{tpu_custom_call.1} parent=11 // pred_fallthru
          _
      $region12: #{tpu_custom_call.1} parent=5 // pred_fallthru
        _
      %p127 = scmp.lt.s32.totalorder %s12, 2
      // Predicated region
      $region21: #{tpu_custom_call.1} parent=5 // pred_check
        %p128 = pneg %p127
      $region22: #{tpu_custom_call.1} parent=5 // pred_check_branch
        %130 = sbr.rel (%p128) target = $region24
      $region23: #{tpu_custom_call.1} parent=5 // pred_region
        // Predicated region
        $region25: #{tpu_custom_call.1} parent=23 // pred_check
          %p131 = pneg %p32
        $region26: #{tpu_custom_call.1} parent=23 // pred_check_branch
          %133 = sbr.rel (%p131) target = $region28
        $region27: #{tpu_custom_call.1} parent=23 // pred_region
          %s134 = smul.u32 64, %s12
          %p135 = scmp.lt.s32.totalorder %s134, 127
          %s136 = scalar_select %p135, %s134, 127
          %s137 = smul.addr %s136, 8
          %s138 = scalar_lea.vmem %s0, %s137
          %s139 = smul.u32 64, %s12
        $region28: #{tpu_custom_call.1} parent=23 // pred_fallthru
          _
      $region24: #{tpu_custom_call.1} parent=5 // pred_fallthru
        _
      %p140 = scmp.le.s32.totalorder 1, %s12
      %p141 = scmp.lt.s32.totalorder %s12, 3
      %p142 = pnand %p140, %p141
      %p143 = pneg %p142
      // Predicated region
      $region29: #{tpu_custom_call.1} parent=5 // pred_check
        _
      $region30: #{tpu_custom_call.1} parent=5 // pred_check_branch
        %145 = sbr.rel (%p142) target = $region32
      $region31: #{tpu_custom_call.1} parent=5 // pred_region
        %s146 = ssub.s32 %s12, 1
        %s147 = smul.u32 64, %s17
        %p148 = scmp.lt.s32.totalorder %s147, 127
        %s149 = scalar_select %p148, %s147, 127
        %s150 = smul.addr %s149, 8
        %s151 = scalar_lea.vmem %s0, %s150
        %p152 = pneg %p38
        %p153 = pneg %p35
        %p154 = pneg %p59
        %p155 = pneg %p56
        %p156 = pneg %p80
        %p157 = pneg %p77
        %p158 = pneg %p106
        %p159 = pneg %p103
        %s160 = sand.u32 %s93, 1
        %s161 = scalar_lea.sflag [#allocation3], %s160
        %s162 = sand.u32 %s93, 1
        %s163 = smul.addr %s162, 512
        %s164 = scalar_lea.vmem [#allocation2], %s163
        %s165 = smul.u32 64, %s17
        %p166 = scmp.lt.s32.totalorder %s165, 127
        %s167 = scalar_select %p166, %s165, 127
        %s168 = smul.addr %s167, 8
        %s169 = scalar_lea.vmem %s0, %s168
        %s170 = smul.u32 64, %s17
        %s171 = smul.u32 64, %s17
        %v172 = vld [vmem:[%s169] sm:$0xff]
        %v173 = vld [vmem:[%s169 + $0x8] sm:$0xff]
        %v174 = vld [vmem:[%s169 + $0x10] sm:$0xff]
        %v175 = vld [vmem:[%s169 + $0x18] sm:$0xff]
        %v176 = vld [vmem:[%s169 + $0x20] sm:$0xff]
        %v177 = vld [vmem:[%s169 + $0x28] sm:$0xff]
        %v178 = vld [vmem:[%s169 + $0x30] sm:$0xff]
        %v179 = vld [vmem:[%s169 + $0x38] sm:$0xff]
        %v180 = vld [vmem:[%s169 + $0x40] sm:$0xff]
        %v181 = vld [vmem:[%s169 + $0x48] sm:$0xff]
        %v182 = vld [vmem:[%s169 + $0x50] sm:$0xff]
        %v183 = vld [vmem:[%s169 + $0x58] sm:$0xff]
        %v184 = vld [vmem:[%s169 + $0x60] sm:$0xff]
        %v185 = vld [vmem:[%s169 + $0x68] sm:$0xff]
        %v186 = vld [vmem:[%s169 + $0x70] sm:$0xff]
        %v187 = vld [vmem:[%s169 + $0x78] sm:$0xff]
        %v188 = vld [vmem:[%s169 + $0x80] sm:$0xff]
        %v189 = vld [vmem:[%s169 + $0x88] sm:$0xff]
        %v190 = vld [vmem:[%s169 + $0x90] sm:$0xff]
        %v191 = vld [vmem:[%s169 + $0x98] sm:$0xff]
        %v192 = vld [vmem:[%s169 + $0xa0] sm:$0xff]
        %v193 = vld [vmem:[%s169 + $0xa8] sm:$0xff]
        %v194 = vld [vmem:[%s169 + $0xb0] sm:$0xff]
        %v195 = vld [vmem:[%s169 + $0xb8] sm:$0xff]
        %v196 = vld [vmem:[%s169 + $0xc0] sm:$0xff]
        %v197 = vld [vmem:[%s169 + $0xc8] sm:$0xff]
        %v198 = vld [vmem:[%s169 + $0xd0] sm:$0xff]
        %v199 = vld [vmem:[%s169 + $0xd8] sm:$0xff]
        %v200 = vld [vmem:[%s169 + $0xe0] sm:$0xff]
        %v201 = vld [vmem:[%s169 + $0xe8] sm:$0xff]
        %v202 = vld [vmem:[%s169 + $0xf0] sm:$0xff]
        %v203 = vld [vmem:[%s169 + $0xf8] sm:$0xff]
        %v204 = vld [vmem:[%s169 + $0x100] sm:$0xff]
        %v205 = vld [vmem:[%s169 + $0x108] sm:$0xff]
        %v206 = vld [vmem:[%s169 + $0x110] sm:$0xff]
        %v207 = vld [vmem:[%s169 + $0x118] sm:$0xff]
        %v208 = vld [vmem:[%s169 + $0x120] sm:$0xff]
        %v209 = vld [vmem:[%s169 + $0x128] sm:$0xff]
        %v210 = vld [vmem:[%s169 + $0x130] sm:$0xff]
        %v211 = vld [vmem:[%s169 + $0x138] sm:$0xff]
        %v212 = vld [vmem:[%s169 + $0x140] sm:$0xff]
        %v213 = vld [vmem:[%s169 + $0x148] sm:$0xff]
        %v214 = vld [vmem:[%s169 + $0x150] sm:$0xff]
        %v215 = vld [vmem:[%s169 + $0x158] sm:$0xff]
        %v216 = vld [vmem:[%s169 + $0x160] sm:$0xff]
        %v217 = vld [vmem:[%s169 + $0x168] sm:$0xff]
        %v218 = vld [vmem:[%s169 + $0x170] sm:$0xff]
        %v219 = vld [vmem:[%s169 + $0x178] sm:$0xff]
        %v220 = vld [vmem:[%s169 + $0x180] sm:$0xff]
        %v221 = vld [vmem:[%s169 + $0x188] sm:$0xff]
        %v222 = vld [vmem:[%s169 + $0x190] sm:$0xff]
        %v223 = vld [vmem:[%s169 + $0x198] sm:$0xff]
        %v224 = vld [vmem:[%s169 + $0x1a0] sm:$0xff]
        %v225 = vld [vmem:[%s169 + $0x1a8] sm:$0xff]
        %v226 = vld [vmem:[%s169 + $0x1b0] sm:$0xff]
        %v227 = vld [vmem:[%s169 + $0x1b8] sm:$0xff]
        %v228 = vld [vmem:[%s169 + $0x1c0] sm:$0xff]
        %v229 = vld [vmem:[%s169 + $0x1c8] sm:$0xff]
        %v230 = vld [vmem:[%s169 + $0x1d0] sm:$0xff]
        %v231 = vld [vmem:[%s169 + $0x1d8] sm:$0xff]
        %v232 = vld [vmem:[%s169 + $0x1e0] sm:$0xff]
        %v233 = vld [vmem:[%s169 + $0x1e8] sm:$0xff]
        %v234 = vld [vmem:[%s169 + $0x1f0] sm:$0xff]
        %v235 = vld [vmem:[%s169 + $0x1f8] sm:$0xff]
        %v236 = vld [vmem:[%s1] sm:$0xff]
        %v237 = vld [vmem:[%s1 + $0x8] sm:$0xff]
        %v238 = vld [vmem:[%s1 + $0x10] sm:$0xff]
        %v239 = vld [vmem:[%s1 + $0x18] sm:$0xff]
        %v240 = vld [vmem:[%s1 + $0x20] sm:$0xff]
        %v241 = vld [vmem:[%s1 + $0x28] sm:$0xff]
        %v242 = vld [vmem:[%s1 + $0x30] sm:$0xff]
        %v243 = vld [vmem:[%s1 + $0x38] sm:$0xff]
        %v244 = vld [vmem:[%s2] sm:$0x1]
        %v246 = vperm.slane %v244, 0
        %vm248 = vcmask 523264
        %v250 = vsel %vm248, %v172, 0
        %v253 = vsel %vm248, %v173, 0
        %v256 = vsel %vm248, %v174, 0
        %v259 = vsel %vm248, %v175, 0
        %v262 = vsel %vm248, %v176, 0
        %v265 = vsel %vm248, %v177, 0
        %v268 = vsel %vm248, %v178, 0
        %v271 = vsel %vm248, %v179, 0
        %v274 = vsel %vm248, %v180, 0
        %v277 = vsel %vm248, %v181, 0
        %v280 = vsel %vm248, %v182, 0
        %v283 = vsel %vm248, %v183, 0
        %v286 = vsel %vm248, %v184, 0
        %v289 = vsel %vm248, %v185, 0
        %v292 = vsel %vm248, %v186, 0
        %v295 = vsel %vm248, %v187, 0
        %v298 = vsel %vm248, %v188, 0
        %v301 = vsel %vm248, %v189, 0
        %v304 = vsel %vm248, %v190, 0
        %v307 = vsel %vm248, %v191, 0
        %v310 = vsel %vm248, %v192, 0
        %v313 = vsel %vm248, %v193, 0
        %v316 = vsel %vm248, %v194, 0
        %v319 = vsel %vm248, %v195, 0
        %v322 = vsel %vm248, %v196, 0
        %v325 = vsel %vm248, %v197, 0
        %v328 = vsel %vm248, %v198, 0
        %v331 = vsel %vm248, %v199, 0
        %v334 = vsel %vm248, %v200, 0
        %v337 = vsel %vm248, %v201, 0
        %v340 = vsel %vm248, %v202, 0
        %v343 = vsel %vm248, %v203, 0
        %v346 = vsel %vm248, %v204, 0
        %v349 = vsel %vm248, %v205, 0
        %v352 = vsel %vm248, %v206, 0
        %v355 = vsel %vm248, %v207, 0
        %v358 = vsel %vm248, %v208, 0
        %v361 = vsel %vm248, %v209, 0
        %v364 = vsel %vm248, %v210, 0
        %v367 = vsel %vm248, %v211, 0
        %v370 = vsel %vm248, %v212, 0
        %v373 = vsel %vm248, %v213, 0
        %v376 = vsel %vm248, %v214, 0
        %v379 = vsel %vm248, %v215, 0
        %v382 = vsel %vm248, %v216, 0
        %v385 = vsel %vm248, %v217, 0
        %v388 = vsel %vm248, %v218, 0
        %v391 = vsel %vm248, %v219, 0
        %v394 = vsel %vm248, %v220, 0
        %v397 = vsel %vm248, %v221, 0
        %v400 = vsel %vm248, %v222, 0
        %v403 = vsel %vm248, %v223, 0
        %v406 = vsel %vm248, %v224, 0
        %v409 = vsel %vm248, %v225, 0
        %v412 = vsel %vm248, %v226, 0
        %v415 = vsel %vm248, %v227, 0
        %v418 = vsel %vm248, %v228, 0
        %v421 = vsel %vm248, %v229, 0
        %v424 = vsel %vm248, %v230, 0
        %v427 = vsel %vm248, %v231, 0
        %v430 = vsel %vm248, %v232, 0
        %v433 = vsel %vm248, %v233, 0
        %v436 = vsel %vm248, %v234, 0
        %v439 = vsel %vm248, %v235, 0
        %441 = vmatpush.msra.mxu0 0.0
        %442 = vmatpush.msra.mxu0 0.0
        %443 = vmatpush.msra.mxu0 0.0
        %444 = vmatpush.msra.mxu0 0.0
        %445 = vmatpush.msra.mxu0 0.0
        %446 = vmatpush.msra.mxu0 0.0
        %447 = vmatpush.msra.mxu0 0.0
        %448 = vmatpush.msra.mxu0 0.0
        %449 = vmatpush.msra.mxu0 %v243
        %450 = vmatpush.msra.mxu0 %v242
        %451 = vmatpush.msra.mxu0 %v241
        %452 = vmatpush.msra.mxu0 %v240
        %453 = vmatpush.msra.mxu0 %v239
        %454 = vmatpush.msra.mxu0 %v238
        %455 = vmatpush.msra.mxu0 %v237
        %456 = vmatpush.msra.mxu0 %v236
        %457 = vmatmul.f32.gmra.mxu0 %v250
        %v458 = vpop.f32.mrf.mxu0
        %v459 = vadd.f32 %v246, %v458
        %460 = vmatmul.f32.gmra.mxu0 %v253
        %v461 = vpop.f32.mrf.mxu0
        %v462 = vadd.f32 %v246, %v461
        %463 = vmatmul.f32.gmra.mxu0 %v256
        %v464 = vpop.f32.mrf.mxu0
        %v465 = vadd.f32 %v246, %v464
        %466 = vmatmul.f32.gmra.mxu0 %v259
        %v467 = vpop.f32.mrf.mxu0
        %v468 = vadd.f32 %v246, %v467
        %469 = vmatmul.f32.gmra.mxu0 %v262
        %v470 = vpop.f32.mrf.mxu0
        %v471 = vadd.f32 %v246, %v470
        %472 = vmatmul.f32.gmra.mxu0 %v265
        %v473 = vpop.f32.mrf.mxu0
        %v474 = vadd.f32 %v246, %v473
        %475 = vmatmul.f32.gmra.mxu0 %v268
        %v476 = vpop.f32.mrf.mxu0
        %v477 = vadd.f32 %v246, %v476
        %478 = vmatmul.f32.gmra.mxu0 %v271
        %v479 = vpop.f32.mrf.mxu0
        %v480 = vadd.f32 %v246, %v479
        %481 = vmatmul.f32.gmra.mxu0 %v274
        %v482 = vpop.f32.mrf.mxu0
        %v483 = vadd.f32 %v246, %v482
        %484 = vmatmul.f32.gmra.mxu0 %v277
        %v485 = vpop.f32.mrf.mxu0
        %v486 = vadd.f32 %v246, %v485
        %487 = vmatmul.f32.gmra.mxu0 %v280
        %v488 = vpop.f32.mrf.mxu0
        %v489 = vadd.f32 %v246, %v488
        %490 = vmatmul.f32.gmra.mxu0 %v283
        %v491 = vpop.f32.mrf.mxu0
        %v492 = vadd.f32 %v246, %v491
        %493 = vmatmul.f32.gmra.mxu0 %v286
        %v494 = vpop.f32.mrf.mxu0
        %v495 = vadd.f32 %v246, %v494
        %496 = vmatmul.f32.gmra.mxu0 %v289
        %v497 = vpop.f32.mrf.mxu0
        %v498 = vadd.f32 %v246, %v497
        %499 = vmatmul.f32.gmra.mxu0 %v292
        %v500 = vpop.f32.mrf.mxu0
        %v501 = vadd.f32 %v246, %v500
        %502 = vmatmul.f32.gmra.mxu0 %v295
        %v503 = vpop.f32.mrf.mxu0
        %v504 = vadd.f32 %v246, %v503
        %505 = vmatmul.f32.gmra.mxu0 %v298
        %v506 = vpop.f32.mrf.mxu0
        %v507 = vadd.f32 %v246, %v506
        %508 = vmatmul.f32.gmra.mxu0 %v301
        %v509 = vpop.f32.mrf.mxu0
        %v510 = vadd.f32 %v246, %v509
        %511 = vmatmul.f32.gmra.mxu0 %v304
        %v512 = vpop.f32.mrf.mxu0
        %v513 = vadd.f32 %v246, %v512
        %514 = vmatmul.f32.gmra.mxu0 %v307
        %v515 = vpop.f32.mrf.mxu0
        %v516 = vadd.f32 %v246, %v515
        %517 = vmatmul.f32.gmra.mxu0 %v310
        %v518 = vpop.f32.mrf.mxu0
        %v519 = vadd.f32 %v246, %v518
        %520 = vmatmul.f32.gmra.mxu0 %v313
        %v521 = vpop.f32.mrf.mxu0
        %v522 = vadd.f32 %v246, %v521
        %523 = vmatmul.f32.gmra.mxu0 %v316
        %v524 = vpop.f32.mrf.mxu0
        %v525 = vadd.f32 %v246, %v524
        %526 = vmatmul.f32.gmra.mxu0 %v319
        %v527 = vpop.f32.mrf.mxu0
        %v528 = vadd.f32 %v246, %v527
        %529 = vmatmul.f32.gmra.mxu0 %v322
        %v530 = vpop.f32.mrf.mxu0
        %v531 = vadd.f32 %v246, %v530
        %532 = vmatmul.f32.gmra.mxu0 %v325
        %v533 = vpop.f32.mrf.mxu0
        %v534 = vadd.f32 %v246, %v533
        %535 = vmatmul.f32.gmra.mxu0 %v328
        %v536 = vpop.f32.mrf.mxu0
        %v537 = vadd.f32 %v246, %v536
        %538 = vmatmul.f32.gmra.mxu0 %v331
        %v539 = vpop.f32.mrf.mxu0
        %v540 = vadd.f32 %v246, %v539
        %541 = vmatmul.f32.gmra.mxu0 %v334
        %v542 = vpop.f32.mrf.mxu0
        %v543 = vadd.f32 %v246, %v542
        %544 = vmatmul.f32.gmra.mxu0 %v337
        %v545 = vpop.f32.mrf.mxu0
        %v546 = vadd.f32 %v246, %v545
        %547 = vmatmul.f32.gmra.mxu0 %v340
        %v548 = vpop.f32.mrf.mxu0
        %v549 = vadd.f32 %v246, %v548
        %550 = vmatmul.f32.gmra.mxu0 %v343
        %v551 = vpop.f32.mrf.mxu0
        %v552 = vadd.f32 %v246, %v551
        %553 = vmatmul.f32.gmra.mxu0 %v346
        %v554 = vpop.f32.mrf.mxu0
        %v555 = vadd.f32 %v246, %v554
        %556 = vmatmul.f32.gmra.mxu0 %v349
        %v557 = vpop.f32.mrf.mxu0
        %v558 = vadd.f32 %v246, %v557
        %559 = vmatmul.f32.gmra.mxu0 %v352
        %v560 = vpop.f32.mrf.mxu0
        %v561 = vadd.f32 %v246, %v560
        %562 = vmatmul.f32.gmra.mxu0 %v355
        %v563 = vpop.f32.mrf.mxu0
        %v564 = vadd.f32 %v246, %v563
        %565 = vmatmul.f32.gmra.mxu0 %v358
        %v566 = vpop.f32.mrf.mxu0
        %v567 = vadd.f32 %v246, %v566
        %568 = vmatmul.f32.gmra.mxu0 %v361
        %v569 = vpop.f32.mrf.mxu0
        %v570 = vadd.f32 %v246, %v569
        %571 = vmatmul.f32.gmra.mxu0 %v364
        %v572 = vpop.f32.mrf.mxu0
        %v573 = vadd.f32 %v246, %v572
        %574 = vmatmul.f32.gmra.mxu0 %v367
        %v575 = vpop.f32.mrf.mxu0
        %v576 = vadd.f32 %v246, %v575
        %577 = vmatmul.f32.gmra.mxu0 %v370
        %v578 = vpop.f32.mrf.mxu0
        %v579 = vadd.f32 %v246, %v578
        %580 = vmatmul.f32.gmra.mxu0 %v373
        %v581 = vpop.f32.mrf.mxu0
        %v582 = vadd.f32 %v246, %v581
        %583 = vmatmul.f32.gmra.mxu0 %v376
        %v584 = vpop.f32.mrf.mxu0
        %v585 = vadd.f32 %v246, %v584
        %586 = vmatmul.f32.gmra.mxu0 %v379
        %v587 = vpop.f32.mrf.mxu0
        %v588 = vadd.f32 %v246, %v587
        %589 = vmatmul.f32.gmra.mxu0 %v382
        %v590 = vpop.f32.mrf.mxu0
        %v591 = vadd.f32 %v246, %v590
        %592 = vmatmul.f32.gmra.mxu0 %v385
        %v593 = vpop.f32.mrf.mxu0
        %v594 = vadd.f32 %v246, %v593
        %595 = vmatmul.f32.gmra.mxu0 %v388
        %v596 = vpop.f32.mrf.mxu0
        %v597 = vadd.f32 %v246, %v596
        %598 = vmatmul.f32.gmra.mxu0 %v391
        %v599 = vpop.f32.mrf.mxu0
        %v600 = vadd.f32 %v246, %v599
        %601 = vmatmul.f32.gmra.mxu0 %v394
        %v602 = vpop.f32.mrf.mxu0
        %v603 = vadd.f32 %v246, %v602
        %604 = vmatmul.f32.gmra.mxu0 %v397
        %v605 = vpop.f32.mrf.mxu0
        %v606 = vadd.f32 %v246, %v605
        %607 = vmatmul.f32.gmra.mxu0 %v400
        %v608 = vpop.f32.mrf.mxu0
        %v609 = vadd.f32 %v246, %v608
        %610 = vmatmul.f32.gmra.mxu0 %v403
        %v611 = vpop.f32.mrf.mxu0
        %v612 = vadd.f32 %v246, %v611
        %613 = vmatmul.f32.gmra.mxu0 %v406
        %v614 = vpop.f32.mrf.mxu0
        %v615 = vadd.f32 %v246, %v614
        %616 = vmatmul.f32.gmra.mxu0 %v409
        %v617 = vpop.f32.mrf.mxu0
        %v618 = vadd.f32 %v246, %v617
        %619 = vmatmul.f32.gmra.mxu0 %v412
        %v620 = vpop.f32.mrf.mxu0
        %v621 = vadd.f32 %v246, %v620
        %622 = vmatmul.f32.gmra.mxu0 %v415
        %v623 = vpop.f32.mrf.mxu0
        %v624 = vadd.f32 %v246, %v623
        %625 = vmatmul.f32.gmra.mxu0 %v418
        %v626 = vpop.f32.mrf.mxu0
        %v627 = vadd.f32 %v246, %v626
        %628 = vmatmul.f32.gmra.mxu0 %v421
        %v629 = vpop.f32.mrf.mxu0
        %v630 = vadd.f32 %v246, %v629
        %631 = vmatmul.f32.gmra.mxu0 %v424
        %v632 = vpop.f32.mrf.mxu0
        %v633 = vadd.f32 %v246, %v632
        %634 = vmatmul.f32.gmra.mxu0 %v427
        %v635 = vpop.f32.mrf.mxu0
        %v636 = vadd.f32 %v246, %v635
        %637 = vmatmul.f32.gmra.mxu0 %v430
        %v638 = vpop.f32.mrf.mxu0
        %v639 = vadd.f32 %v246, %v638
        %640 = vmatmul.f32.gmra.mxu0 %v433
        %v641 = vpop.f32.mrf.mxu0
        %v642 = vadd.f32 %v246, %v641
        %643 = vmatmul.f32.gmra.mxu0 %v436
        %v644 = vpop.f32.mrf.mxu0
        %v645 = vadd.f32 %v246, %v644
        %646 = vmatmul.f32.gmra.mxu0 %v439
        %v647 = vpop.f32.mrf.mxu0
        %v648 = vadd.f32 %v246, %v647
        %649 = vdwg.mxu0
        %v650 = vmax.f32 %v459, 0.0
        %v651 = vmax.f32 %v462, 0.0
        %v652 = vmax.f32 %v465, 0.0
        %v653 = vmax.f32 %v468, 0.0
        %v654 = vmax.f32 %v471, 0.0
        %v655 = vmax.f32 %v474, 0.0
        %v656 = vmax.f32 %v477, 0.0
        %v657 = vmax.f32 %v480, 0.0
        %v658 = vmax.f32 %v483, 0.0
        %v659 = vmax.f32 %v486, 0.0
        %v660 = vmax.f32 %v489, 0.0
        %v661 = vmax.f32 %v492, 0.0
        %v662 = vmax.f32 %v495, 0.0
        %v663 = vmax.f32 %v498, 0.0
        %v664 = vmax.f32 %v501, 0.0
        %v665 = vmax.f32 %v504, 0.0
        %v666 = vmax.f32 %v507, 0.0
        %v667 = vmax.f32 %v510, 0.0
        %v668 = vmax.f32 %v513, 0.0
        %v669 = vmax.f32 %v516, 0.0
        %v670 = vmax.f32 %v519, 0.0
        %v671 = vmax.f32 %v522, 0.0
        %v672 = vmax.f32 %v525, 0.0
        %v673 = vmax.f32 %v528, 0.0
        %v674 = vmax.f32 %v531, 0.0
        %v675 = vmax.f32 %v534, 0.0
        %v676 = vmax.f32 %v537, 0.0
        %v677 = vmax.f32 %v540, 0.0
        %v678 = vmax.f32 %v543, 0.0
        %v679 = vmax.f32 %v546, 0.0
        %v680 = vmax.f32 %v549, 0.0
        %v681 = vmax.f32 %v552, 0.0
        %v682 = vmax.f32 %v555, 0.0
        %v683 = vmax.f32 %v558, 0.0
        %v684 = vmax.f32 %v561, 0.0
        %v685 = vmax.f32 %v564, 0.0
        %v686 = vmax.f32 %v567, 0.0
        %v687 = vmax.f32 %v570, 0.0
        %v688 = vmax.f32 %v573, 0.0
        %v689 = vmax.f32 %v576, 0.0
        %v690 = vmax.f32 %v579, 0.0
        %v691 = vmax.f32 %v582, 0.0
        %v692 = vmax.f32 %v585, 0.0
        %v693 = vmax.f32 %v588, 0.0
        %v694 = vmax.f32 %v591, 0.0
        %v695 = vmax.f32 %v594, 0.0
        %v696 = vmax.f32 %v597, 0.0
        %v697 = vmax.f32 %v600, 0.0
        %v698 = vmax.f32 %v603, 0.0
        %v699 = vmax.f32 %v606, 0.0
        %v700 = vmax.f32 %v609, 0.0
        %v701 = vmax.f32 %v612, 0.0
        %v702 = vmax.f32 %v615, 0.0
        %v703 = vmax.f32 %v618, 0.0
        %v704 = vmax.f32 %v621, 0.0
        %v705 = vmax.f32 %v624, 0.0
        %v706 = vmax.f32 %v627, 0.0
        %v707 = vmax.f32 %v630, 0.0
        %v708 = vmax.f32 %v633, 0.0
        %v709 = vmax.f32 %v636, 0.0
        %v710 = vmax.f32 %v639, 0.0
        %v711 = vmax.f32 %v642, 0.0
        %v712 = vmax.f32 %v645, 0.0
        %v713 = vmax.f32 %v648, 0.0
        %714 = vst [vmem:[%s164] sm:$0xff] %v650
        %715 = vst [vmem:[%s164 + $0x8] sm:$0xff] %v651
        %716 = vst [vmem:[%s164 + $0x10] sm:$0xff] %v652
        %717 = vst [vmem:[%s164 + $0x18] sm:$0xff] %v653
        %718 = vst [vmem:[%s164 + $0x20] sm:$0xff] %v654
        %719 = vst [vmem:[%s164 + $0x28] sm:$0xff] %v655
        %720 = vst [vmem:[%s164 + $0x30] sm:$0xff] %v656
        %721 = vst [vmem:[%s164 + $0x38] sm:$0xff] %v657
        %722 = vst [vmem:[%s164 + $0x40] sm:$0xff] %v658
        %723 = vst [vmem:[%s164 + $0x48] sm:$0xff] %v659
        %724 = vst [vmem:[%s164 + $0x50] sm:$0xff] %v660
        %725 = vst [vmem:[%s164 + $0x58] sm:$0xff] %v661
        %726 = vst [vmem:[%s164 + $0x60] sm:$0xff] %v662
        %727 = vst [vmem:[%s164 + $0x68] sm:$0xff] %v663
        %728 = vst [vmem:[%s164 + $0x70] sm:$0xff] %v664
        %729 = vst [vmem:[%s164 + $0x78] sm:$0xff] %v665
        %730 = vst [vmem:[%s164 + $0x80] sm:$0xff] %v666
        %731 = vst [vmem:[%s164 + $0x88] sm:$0xff] %v667
        %732 = vst [vmem:[%s164 + $0x90] sm:$0xff] %v668
        %733 = vst [vmem:[%s164 + $0x98] sm:$0xff] %v669
        %734 = vst [vmem:[%s164 + $0xa0] sm:$0xff] %v670
        %735 = vst [vmem:[%s164 + $0xa8] sm:$0xff] %v671
        %736 = vst [vmem:[%s164 + $0xb0] sm:$0xff] %v672
        %737 = vst [vmem:[%s164 + $0xb8] sm:$0xff] %v673
        %738 = vst [vmem:[%s164 + $0xc0] sm:$0xff] %v674
        %739 = vst [vmem:[%s164 + $0xc8] sm:$0xff] %v675
        %740 = vst [vmem:[%s164 + $0xd0] sm:$0xff] %v676
        %741 = vst [vmem:[%s164 + $0xd8] sm:$0xff] %v677
        %742 = vst [vmem:[%s164 + $0xe0] sm:$0xff] %v678
        %743 = vst [vmem:[%s164 + $0xe8] sm:$0xff] %v679
        %744 = vst [vmem:[%s164 + $0xf0] sm:$0xff] %v680
        %745 = vst [vmem:[%s164 + $0xf8] sm:$0xff] %v681
        %746 = vst [vmem:[%s164 + $0x100] sm:$0xff] %v682
        %747 = vst [vmem:[%s164 + $0x108] sm:$0xff] %v683
        %748 = vst [vmem:[%s164 + $0x110] sm:$0xff] %v684
        %749 = vst [vmem:[%s164 + $0x118] sm:$0xff] %v685
        %750 = vst [vmem:[%s164 + $0x120] sm:$0xff] %v686
        %751 = vst [vmem:[%s164 + $0x128] sm:$0xff] %v687
        %752 = vst [vmem:[%s164 + $0x130] sm:$0xff] %v688
        %753 = vst [vmem:[%s164 + $0x138] sm:$0xff] %v689
        %754 = vst [vmem:[%s164 + $0x140] sm:$0xff] %v690
        %755 = vst [vmem:[%s164 + $0x148] sm:$0xff] %v691
        %756 = vst [vmem:[%s164 + $0x150] sm:$0xff] %v692
        %757 = vst [vmem:[%s164 + $0x158] sm:$0xff] %v693
        %758 = vst [vmem:[%s164 + $0x160] sm:$0xff] %v694
        %759 = vst [vmem:[%s164 + $0x168] sm:$0xff] %v695
        %760 = vst [vmem:[%s164 + $0x170] sm:$0xff] %v696
        %761 = vst [vmem:[%s164 + $0x178] sm:$0xff] %v697
        %762 = vst [vmem:[%s164 + $0x180] sm:$0xff] %v698
        %763 = vst [vmem:[%s164 + $0x188] sm:$0xff] %v699
        %764 = vst [vmem:[%s164 + $0x190] sm:$0xff] %v700
        %765 = vst [vmem:[%s164 + $0x198] sm:$0xff] %v701
        %766 = vst [vmem:[%s164 + $0x1a0] sm:$0xff] %v702
        %767 = vst [vmem:[%s164 + $0x1a8] sm:$0xff] %v703
        %768 = vst [vmem:[%s164 + $0x1b0] sm:$0xff] %v704
        %769 = vst [vmem:[%s164 + $0x1b8] sm:$0xff] %v705
        %770 = vst [vmem:[%s164 + $0x1c0] sm:$0xff] %v706
        %771 = vst [vmem:[%s164 + $0x1c8] sm:$0xff] %v707
        %772 = vst [vmem:[%s164 + $0x1d0] sm:$0xff] %v708
        %773 = vst [vmem:[%s164 + $0x1d8] sm:$0xff] %v709
        %774 = vst [vmem:[%s164 + $0x1e0] sm:$0xff] %v710
        %775 = vst [vmem:[%s164 + $0x1e8] sm:$0xff] %v711
        %776 = vst [vmem:[%s164 + $0x1f0] sm:$0xff] %v712
        %777 = vst [vmem:[%s164 + $0x1f8] sm:$0xff] %v713
        %s778 = sand.u32 %s93, 1
        %s779 = scalar_lea.sflag [#allocation3], %s778
        %s780 = sand.u32 %s93, 1
        %s781 = smul.addr %s780, 512
        %s782 = scalar_lea.vmem [#allocation2], %s781
        // Predicated region
        $region33: #{tpu_custom_call.1} parent=31 // pred_check
          %p783 = pneg %p103
        $region34: #{tpu_custom_call.1} parent=31 // pred_check_branch
          %785 = sbr.rel (%p783) target = $region36
        $region35: #{tpu_custom_call.1} parent=31 // pred_region
          %s786 = smul.u32 64, %s17
          %788 = vsyncadd %s779, 0
          %s789 = smul.addr %s786, 8
          %s790 = scalar_lea.hbm %s3, %s789
          %s791 = sshll.u32 %s782, 4
          %s792 = int_to_ptr.vmem [resolvable:$true] %s791
          %s793 = sshll.u32 %s790, 4
          %s794 = int_to_ptr.hbm [resolvable:$true] %s793
          %799 = dma.vmem_to_hbm [thread:$0]  %s792, 8192, %s794, %s779, 128, 128, 8
        $region36: #{tpu_custom_call.1} parent=31 // pred_fallthru
          _
      $region32: #{tpu_custom_call.1} parent=5 // pred_fallthru
        _
      %p800 = scmp.le.s32.totalorder 2, %s12
      // Predicated region
      $region37: #{tpu_custom_call.1} parent=5 // pred_check
        %p801 = pneg %p800
      $region38: #{tpu_custom_call.1} parent=5 // pred_check_branch
        %803 = sbr.rel (%p801) target = $region40
      $region39: #{tpu_custom_call.1} parent=5 // pred_region
        %s804 = ssub.s32 %s12, 2
        // Predicated region
        $region41: #{tpu_custom_call.1} parent=39 // pred_check
          %p805 = pneg %p109
        $region42: #{tpu_custom_call.1} parent=39 // pred_check_branch
          %807 = sbr.rel (%p805) target = $region44
        $region43: #{tpu_custom_call.1} parent=39 // pred_region
          %s808 = sand.u32 %s94, 1
          %s809 = scalar_lea.sflag [#allocation3], %s808
          %s810 = sand.u32 %s94, 1
          %s811 = smul.addr %s810, 512
          %s812 = scalar_lea.vmem [#allocation2], %s811
          %814 = dma.done %s809, 8192
        $region44: #{tpu_custom_call.1} parent=39 // pred_fallthru
          _
      $region40: #{tpu_custom_call.1} parent=5 // pred_fallthru
        _
    $region6: #{tpu_custom_call.1} parent=1 // loop_footer
      %s16 = sadd.s32 1, %s12
    $region7: #{tpu_custom_call.1} parent=1 // loop_footer_branch
      %11 = sbr.rel target = $region3
    $region8: #{tpu_custom_call.1} parent=1 // loop_exit
      _
    %815 = vsyncpa [#allocation3], 1
    %s816 = scalar_lea.sflag [#allocation3], 1
    %817 = vsyncpa %s816, 1

</llo_original>
